<compile_context>
chip_gen: v5e
topology: v5e:2x2
jax: 0.10.0
libtpu: 0.0.40
codegen_flags: <defaults>
</compile_context>

<pallas_src>
import math

import jax
import jax.numpy as jnp
from jax import lax
from jax.experimental import pallas as pl
from jax.experimental.pallas import tpu as pltpu

SOS_TOKEN = 1
NEG_INF = -1e9
TIME_BLOCK = 16          # timesteps per grid step (amortises grid/DMA overhead)


def _round_up(x, m):
    return (x + m - 1) // m * m


def _nbytes(a):
    return a.size * a.dtype.itemsize


def _pick_tile(total, target, gran):
    """Largest tile <= target that divides `total` (total is a multiple of gran)."""
    if total <= target:
        return total
    t = (target // gran) * gran
    while t > gran and total % t != 0:
        t -= gran
    return t if total % t == 0 else gran


def _time_block(steps):
    k = min(TIME_BLOCK, steps)
    return k, _round_up(steps, k)


def _cparams(semantics, nbytes):
    """CompilerParams with an explicit VMEM limit sized from the operand footprint."""
    limit = int(min(100 << 20, max(32 << 20, 2 * nbytes + (4 << 20))))
    return pltpu.CompilerParams(dimension_semantics=semantics,
                                vmem_limit_bytes=limit)


# ---------------------------------------------------------------------------
# Tiled dense matmul kernel (gi-table precompute + batched vocab projection)
# ---------------------------------------------------------------------------
def _linear_kernel(x_ref, w_ref, b_ref, o_ref):
    o_ref[...] = (jnp.dot(x_ref[...], w_ref[...],
                          preferred_element_type=jnp.float32) + b_ref[...])


def linear_pallas(x, w, b, *, tile_m=256, tile_n=512):
    """y = x @ w + b with (row, lane) output tiling; bf16 MXU operands, f32 out."""
    M, K = x.shape
    N = w.shape[1]
    tm = _pick_tile(M, tile_m, 8)
    tn = _pick_tile(N, tile_n, 128)
    nbytes = 2 * (tm * K * x.dtype.itemsize + K * tn * w.dtype.itemsize
                  + tn * 4 + tm * tn * 4)
    return pl.pallas_call(
        _linear_kernel,
        out_shape=jax.ShapeDtypeStruct((M, N), jnp.float32),
        grid=(M // tm, N // tn),
        in_specs=[
            pl.BlockSpec((tm, K), lambda i, j: (i, 0)),
            pl.BlockSpec((K, tn), lambda i, j: (0, j)),
            pl.BlockSpec((1, tn), lambda i, j: (0, j)),
        ],
        out_specs=pl.BlockSpec((tm, tn), lambda i, j: (i, j)),
        compiler_params=_cparams(("parallel", "parallel"), nbytes),
    )(x, w, b)


# ---------------------------------------------------------------------------
# GRU recurrence kernels (time axis blocked, weights & state VMEM-resident)
# ---------------------------------------------------------------------------
def _gru_gates(gi, gh, h, bhn, H):
    """PyTorch nn.GRU gate math. gi already contains b_ih (+ folded b_hr, b_hz)."""
    gi = gi.astype(jnp.float32)
    r = jax.nn.sigmoid(gi[:, :H] + gh[:, :H])
    z = jax.nn.sigmoid(gi[:, H:2 * H] + gh[:, H:2 * H])
    n = jnp.tanh(gi[:, 2 * H:] + r * (gh[:, 2 * H:] + bhn))
    return (1.0 - z) * n + z * h


def _enc_gru_kernel(len_ref, gi_ref, whh_ref, bhn_ref, h_ref):
    """Encoder recurrence: K timesteps per grid step, h_ref is the resident state."""
    blk = pl.program_id(0)
    K = gi_ref.shape[0]
    H = h_ref.shape[-1]

    @pl.when(blk == 0)
    def _():
        h_ref[...] = jnp.zeros_like(h_ref)

    lens = len_ref[...]                                    # [B, 1] int32
    whh = whh_ref[...]
    bhn = bhn_ref[...]

    def step(i, h):
        gh = jnp.dot(h.astype(jnp.bfloat16), whh,
                     preferred_element_type=jnp.float32)
        h_new = _gru_gates(gi_ref[i], gh, h, bhn, H)
        keep = (blk * K + i) < lens                        # in-kernel padding mask
        return jnp.where(keep, h_new, h)

    h_ref[...] = lax.fori_loop(0, K, step, h_ref[...], unroll=True)


def _dec_tf_gru_kernel(h0_ref, gi_ref, whh_ref, bhn_ref, hs_ref, h_state):
    """Teacher-forced decoder: K steps per grid step, emits bf16 hidden states."""
    blk = pl.program_id(0)
    K = gi_ref.shape[0]
    H = h_state.shape[-1]

    @pl.when(blk == 0)
    def _():
        h_state[...] = h0_ref[...]

    whh = whh_ref[...]
    bhn = bhn_ref[...]

    def step(i, h):
        gh = jnp.dot(h.astype(jnp.bfloat16), whh,
                     preferred_element_type=jnp.float32)
        h_new = _gru_gates(gi_ref[i], gh, h, bhn, H)
        hs_ref[i] = h_new.astype(jnp.bfloat16)             # bf16 straight to HBM
        return h_new

    h_state[...] = lax.fori_loop(0, K, step, h_state[...], unroll=True)


def _free_decode_kernel(h0_ref, gtab_ref, whh_ref, bhn_ref, ow_ref, ob_ref,
                        logits_ref, h_state, onehot_state):
    """Free-running greedy decode: embedding lookup (bf16 one-hot @ gi_table),
    GRU step, vocab projection and argmax feedback, fused, K steps per block."""
    blk = pl.program_id(0)
    K = logits_ref.shape[0]
    B, V = onehot_state.shape
    H = h_state.shape[-1]
    lane = lax.broadcasted_iota(jnp.int32, (B, V), 1)      # hoisted out of the loop

    @pl.when(blk == 0)
    def _():
        h_state[...] = h0_ref[...]
        onehot_state[...] = (lane == SOS_TOKEN).astype(jnp.bfloat16)

    gtab = gtab_ref[...]
    whh = whh_ref[...]
    bhn = bhn_ref[...]
    ow = ow_ref[...]
    ob = ob_ref[...]

    def step(k, carry):
        h, onehot = carry
        gi = jnp.dot(onehot, gtab, preferred_element_type=jnp.float32)
        gh = jnp.dot(h.astype(jnp.bfloat16), whh,
                     preferred_element_type=jnp.float32)
        h_new = _gru_gates(gi, gh, h, bhn, H)
        logits = jnp.dot(h_new.astype(jnp.bfloat16), ow,
                         preferred_element_type=jnp.float32) + ob
        logits_ref[k] = logits
        # Greedy argmax (first max wins, matching jnp.argmax) -> next one-hot.
        m = jnp.max(logits, axis=-1, keepdims=True)
        idx = jnp.min(jnp.where(logits == m, lane, V), axis=-1, keepdims=True)
        return h_new, (lane == idx).astype(jnp.bfloat16)

    h, onehot = lax.fori_loop(0, K, step,
                              (h_state[...], onehot_state[...]), unroll=True)
    h_state[...] = h
    onehot_state[...] = onehot


# ---------------------------------------------------------------------------
# Parameter init (deterministic, PyTorch-style uniform(-1/sqrt(H), 1/sqrt(H)))
# ---------------------------------------------------------------------------
def init_params(key, vocab, emb, hid):
    ks = jax.random.split(key, 11)
    s = 1.0 / math.sqrt(hid)

    def u(k, shape):
        return jax.random.uniform(k, shape, jnp.float32, -s, s)

    return {
        "embedding": jax.random.normal(ks[0], (vocab, emb), jnp.float32) * 0.1,
        "enc_w_ih": u(ks[1], (emb, 3 * hid)),
        "enc_w_hh": u(ks[2], (hid, 3 * hid)),
        "enc_b_ih": u(ks[3], (1, 3 * hid)),
        "enc_b_hh": u(ks[4], (1, 3 * hid)),
        "dec_w_ih": u(ks[5], (emb, 3 * hid)),
        "dec_w_hh": u(ks[6], (hid, 3 * hid)),
        "dec_b_ih": u(ks[7], (1, 3 * hid)),
        "dec_b_hh": u(ks[8], (1, 3 * hid)),
        "out_w": u(ks[9], (hid, vocab)),
        "out_b": u(ks[10], (1, vocab)),
    }


def prepare_params(params, vocab, emb, hid):
    """Pad to (8,128)-friendly shapes, fold biases, precompute gi tables (bf16),
    and cast MXU weight operands to bf16."""
    H_pad = _round_up(hid, 128)
    V_pad = _round_up(vocab, 128)
    GH = 3 * H_pad

    def pad_gate_mat(w, rows_out):
        # w: [rows, 3*hid] -> [rows_out, 3*H_pad], padded per gate (r, z, n).
        out = jnp.zeros((rows_out, GH), jnp.float32)
        for g in range(3):
            out = out.at[:w.shape[0], g * H_pad:g * H_pad + hid].set(
                w[:, g * hid:(g + 1) * hid])
        return out

    emb_pad = jnp.zeros((V_pad, emb), jnp.float32).at[:vocab].set(
        params["embedding"])

    pp = {"H_pad": H_pad, "V_pad": V_pad, "vocab": vocab, "hid": hid}
    for pre in ("enc", "dec"):
        w_ih = pad_gate_mat(params[f"{pre}_w_ih"], emb)       # [E, GH]
        bias = pad_gate_mat(params[f"{pre}_b_ih"], 1)         # [1, GH]
        b_hh = params[f"{pre}_b_hh"]
        # Fold b_hr, b_hz into the input-side bias (b_hn must stay inside r*(...)).
        bias = bias.at[:, :hid].add(b_hh[:, :hid])
        bias = bias.at[:, H_pad:H_pad + hid].add(b_hh[:, hid:2 * hid])
        # gi_table[v] = emb[v] @ W_ih + b_ih + [b_hr, b_hz, 0]   (stored bf16)
        gi_tab = linear_pallas(emb_pad.astype(jnp.bfloat16),
                               w_ih.astype(jnp.bfloat16), bias)
        pp[f"{pre}_gi_table"] = gi_tab.astype(jnp.bfloat16)            # [V_pad, GH]
        pp[f"{pre}_whh"] = pad_gate_mat(params[f"{pre}_w_hh"],
                                        H_pad).astype(jnp.bfloat16)    # [H_pad, GH]
        pp[f"{pre}_bhn"] = jnp.zeros((1, H_pad), jnp.float32).at[:, :hid].set(
            b_hh[:, 2 * hid:])                                         # [1, H_pad]

    pp["out_w"] = (jnp.zeros((H_pad, V_pad), jnp.float32)
                   .at[:hid, :vocab].set(params["out_w"])).astype(jnp.bfloat16)
    # Padded vocab columns get a huge negative bias so argmax never picks them.
    pp["out_b"] = (jnp.full((1, V_pad), NEG_INF, jnp.float32)
                   .at[:, :vocab].set(params["out_b"]))
    return pp


# ---------------------------------------------------------------------------
# Generator forward
# ---------------------------------------------------------------------------
def _gather_gi(table, tokens, B_pad, T_pad):
    """Time-major gi gather: [T_pad, B_pad, GH] bf16 (no transpose copy)."""
    B, T = tokens.shape
    gi = jnp.take(table, tokens.T, axis=0)                  # [T, B, GH] directly
    return jnp.pad(gi, ((0, T_pad - T), (0, B_pad - B), (0, 0)))


def _encode(pp, seq, seq_length):
    B, S = seq.shape
    H_pad = pp["H_pad"]
    GH = 3 * H_pad
    B_pad = _round_up(B, 8)
    K, S_pad = _time_block(S)

    gi = _gather_gi(pp["enc_gi_table"], seq, B_pad, S_pad)
    lens = jnp.zeros((B_pad, 1), jnp.int32).at[:B, 0].set(
        seq_length.astype(jnp.int32))

    nbytes = (2 * K * B_pad * GH * 2 + _nbytes(lens) + _nbytes(pp["enc_whh"])
              + _nbytes(pp["enc_bhn"]) + 2 * B_pad * H_pad * 4)
    h_enc = pl.pallas_call(
        _enc_gru_kernel,
        out_shape=jax.ShapeDtypeStruct((B_pad, H_pad), jnp.float32),
        grid=(S_pad // K,),
        in_specs=[
            pl.BlockSpec((B_pad, 1), lambda i: (0, 0)),          # seq_length
            pl.BlockSpec((K, B_pad, GH), lambda i: (i, 0, 0)),   # gi stream (bf16)
            pl.BlockSpec((H_pad, GH), lambda i: (0, 0)),         # W_hh resident
            pl.BlockSpec((1, H_pad), lambda i: (0, 0)),          # b_hn resident
        ],
        out_specs=pl.BlockSpec((B_pad, H_pad), lambda i: (0, 0)),
        compiler_params=_cparams(("arbitrary",), nbytes),
    )(lens, gi, pp["enc_whh"], pp["enc_bhn"])
    return h_enc, B_pad


def generator_forward_teacher(pp, seq, seq_length, target):
    B, T = target.shape
    V, H_pad, V_pad = pp["vocab"], pp["H_pad"], pp["V_pad"]
    GH = 3 * H_pad
    h_enc, B_pad = _encode(pp, seq, seq_length)
    K, T_pad = _time_block(T)

    dec_in = jnp.concatenate(
        [jnp.full((B, 1), SOS_TOKEN, jnp.int32), target[:, :-1]], axis=1)
    gi = _gather_gi(pp["dec_gi_table"], dec_in, B_pad, T_pad)

    nbytes = (2 * K * B_pad * GH * 2 + _nbytes(h_enc) + _nbytes(pp["dec_whh"])
              + _nbytes(pp["dec_bhn"]) + 2 * K * B_pad * H_pad * 2
              + B_pad * H_pad * 4)
    hs = pl.pallas_call(
        _dec_tf_gru_kernel,
        out_shape=jax.ShapeDtypeStruct((T_pad, B_pad, H_pad), jnp.bfloat16),
        grid=(T_pad // K,),
        in_specs=[
            pl.BlockSpec((B_pad, H_pad), lambda i: (0, 0)),      # h0 resident
            pl.BlockSpec((K, B_pad, GH), lambda i: (i, 0, 0)),   # gi stream (bf16)
            pl.BlockSpec((H_pad, GH), lambda i: (0, 0)),
            pl.BlockSpec((1, H_pad), lambda i: (0, 0)),
        ],
        out_specs=pl.BlockSpec((K, B_pad, H_pad), lambda i: (i, 0, 0)),
        scratch_shapes=[pltpu.VMEM((B_pad, H_pad), jnp.float32)],
        compiler_params=_cparams(("arbitrary",), nbytes),
    )(h_enc, gi, pp["dec_whh"], pp["dec_bhn"])

    # One tiled batched vocab projection for all timesteps (hs already bf16).
    logits_flat = linear_pallas(hs.reshape(T_pad * B_pad, H_pad),
                                pp["out_w"], pp["out_b"])        # [T_pad*B_pad, V_pad]
    logits = logits_flat.reshape(T_pad, B_pad, V_pad)[:T, :B, :V]
    token_logits = jnp.transpose(logits, (1, 0, 2))              # [B, T, V]
    all_output = jnp.argmax(token_logits, axis=-1).astype(jnp.int32)
    return all_output, token_logits


def generator_forward_free(pp, seq, seq_length, max_gen_len):
    B = seq.shape[0]
    V, H_pad, V_pad = pp["vocab"], pp["H_pad"], pp["V_pad"]
    GH = 3 * H_pad
    h_enc, B_pad = _encode(pp, seq, seq_length)
    K, T_pad = _time_block(max_gen_len)

    nbytes = (_nbytes(h_enc) + _nbytes(pp["dec_gi_table"]) + _nbytes(pp["dec_whh"])
              + _nbytes(pp["dec_bhn"]) + _nbytes(pp["out_w"]) + _nbytes(pp["out_b"])
              + 2 * K * B_pad * V_pad * 4 + B_pad * H_pad * 4 + B_pad * V_pad * 2)
    logits_all = pl.pallas_call(
        _free_decode_kernel,
        out_shape=jax.ShapeDtypeStruct((T_pad, B_pad, V_pad), jnp.float32),
        grid=(T_pad // K,),
        in_specs=[
            pl.BlockSpec((B_pad, H_pad), lambda i: (0, 0)),      # h0
            pl.BlockSpec((V_pad, GH), lambda i: (0, 0)),         # gi table (bf16)
            pl.BlockSpec((H_pad, GH), lambda i: (0, 0)),         # W_hh
            pl.BlockSpec((1, H_pad), lambda i: (0, 0)),          # b_hn
            pl.BlockSpec((H_pad, V_pad), lambda i: (0, 0)),      # out_w (bf16)
            pl.BlockSpec((1, V_pad), lambda i: (0, 0)),          # out_b
        ],
        out_specs=pl.BlockSpec((K, B_pad, V_pad), lambda i: (i, 0, 0)),
        scratch_shapes=[pltpu.VMEM((B_pad, H_pad), jnp.float32),
                        pltpu.VMEM((B_pad, V_pad), jnp.bfloat16)],
        compiler_params=_cparams(("arbitrary",), nbytes),
    )(h_enc, pp["dec_gi_table"], pp["dec_whh"], pp["dec_bhn"],
      pp["out_w"], pp["out_b"])

    logits = logits_all[:max_gen_len, :B, :V]                    # [T, B, V]
    token_logits = jnp.transpose(logits, (1, 0, 2))              # [B, T, V]
    all_output = jnp.argmax(token_logits, axis=-1).astype(jnp.int32)
    return all_output, token_logits


def seqgan_forward(pp, seq, seq_length, target=None, max_gen_len=8):
    """Mirrors SeqGAN.forward: token_logits if target given, else all_output."""
    if target is not None:
        _, token_logits = generator_forward_teacher(pp, seq, seq_length, target)
        return token_logits
    all_output, _ = generator_forward_free(pp, seq, seq_length, max_gen_len)
    return all_output


# ---------------------------------------------------------------------------
if __name__ == "__main__":
    VOCAB, EMB, HID = 64, 32, 32
    B, S = 2, 8

    key = jax.random.PRNGKey(0)
    pkey, skey, tkey = jax.random.split(key, 3)

    params = init_params(pkey, VOCAB, EMB, HID)
    pp = prepare_params(params, VOCAB, EMB, HID)

    seq = jax.random.randint(skey, (B, S), 0, VOCAB, dtype=jnp.int32)
    seq_length = jnp.array([S, S - 2], jnp.int32)
    target = jax.random.randint(tkey, (B, S), 0, VOCAB, dtype=jnp.int32)

    # target provided -> token_logits
    token_logits = seqgan_forward(pp, seq, seq_length, target)
    # no target -> all_output (greedy generated tokens)
    all_output = seqgan_forward(pp, seq, seq_length, None, max_gen_len=S)

    jax.block_until_ready((token_logits, all_output))
    assert token_logits.shape == (B, S, VOCAB) and token_logits.dtype == jnp.float32
    assert all_output.shape == (B, S) and all_output.dtype == jnp.int32
    assert bool(jnp.all(jnp.isfinite(token_logits)))
    assert bool(jnp.all((all_output >= 0) & (all_output < VOCAB)))
    print("KERNEL_OK")
</pallas_src>

<mosaic_0001>
module attributes {stable_mosaic.version = 11 : i64} {
  func.func @_linear_kernel(%arg0: i32, %arg1: i32, %arg2: memref<128x32xbf16, #tpu.memory_space<vmem>>, %arg3: memref<32x384xbf16, #tpu.memory_space<vmem>>, %arg4: memref<1x384xf32, #tpu.memory_space<vmem>>, %arg5: memref<128x384xf32, #tpu.memory_space<vmem>>) attributes {dimension_semantics = [#tpu.dimension_semantics<parallel>, #tpu.dimension_semantics<parallel>], iteration_bounds = array<i64: 1, 1>, scalar_prefetch = 0 : i64, scratch_operands = 0 : i64, tpu.core_type = #tpu.core_type<tc>, window_params = [{transform_indices = @transform_0, window_bounds = array<i64: 128, 32>}, {transform_indices = @transform_1, window_bounds = array<i64: 32, 384>}, {transform_indices = @transform_2, window_bounds = array<i64: 1, 384>}, {transform_indices = @transform_3, window_bounds = array<i64: 128, 384>}]} {
    %c0 = arith.constant 0 : index
    %c0_0 = arith.constant 0 : index
    %0 = vector.load %arg2[%c0, %c0_0] : memref<128x32xbf16, #tpu.memory_space<vmem>>, vector<128x32xbf16>
    %c0_1 = arith.constant 0 : index
    %c0_2 = arith.constant 0 : index
    %1 = vector.load %arg3[%c0_1, %c0_2] : memref<32x384xbf16, #tpu.memory_space<vmem>>, vector<32x384xbf16>
    %cst = arith.constant dense<0.000000e+00> : vector<128x384xf32>
    %2 = tpu.matmul %0, %1, %cst {dimension_numbers = #tpu.dot_dimension_numbers<[1], [0], [0], [1], [0, 0, 1, 1], [], []>} : vector<128x32xbf16>, vector<32x384xbf16>, vector<128x384xf32> -> vector<128x384xf32>
    %c0_3 = arith.constant 0 : index
    %c0_4 = arith.constant 0 : index
    %3 = vector.load %arg4[%c0_3, %c0_4] : memref<1x384xf32, #tpu.memory_space<vmem>>, vector<1x384xf32>
    %4 = vector.broadcast %3 : vector<1x384xf32> to vector<128x384xf32>
    %5 = arith.addf %2, %4 : vector<128x384xf32>
    %c0_5 = arith.constant 0 : index
    %c0_6 = arith.constant 0 : index
    %6 = vector.load %arg5[%c0_5, %c0_6] : memref<128x384xf32, #tpu.memory_space<vmem>>, vector<128x384xf32>
    tpu.vector_store %arg5[%c0_5, %c0_6], %5 {strides = array<i32>} : memref<128x384xf32, #tpu.memory_space<vmem>>, vector<128x384xf32>,
    return
  }
  func.func @transform_0(%arg0: i32, %arg1: i32) -> (i32, i32) {
    %c0_i32 = arith.constant 0 : i32
    %c0_i32_0 = arith.constant 0 : i32
    return %arg0, %c0_i32 : i32, i32
  }
  func.func @transform_1(%arg0: i32, %arg1: i32) -> (i32, i32) {
    %c0_i32 = arith.constant 0 : i32
    %c0_i32_0 = arith.constant 0 : i32
    return %c0_i32, %arg1 : i32, i32
  }
  func.func @transform_2(%arg0: i32, %arg1: i32) -> (i32, i32) {
    %c0_i32 = arith.constant 0 : i32
    %c0_i32_0 = arith.constant 0 : i32
    return %c0_i32, %arg1 : i32, i32
  }
  func.func @transform_3(%arg0: i32, %arg1: i32) -> (i32, i32) {
    %c0_i32 = arith.constant 0 : i32
    return %arg0, %arg1 : i32, i32
  }
}

</mosaic_0001>

<llo_original>
// kernel: tpu_custom_call.1
$region0: #{tpu_custom_call.1}
  #allocation0 [shape = 'u32[]', space=smem, size = 0x4, offset = 0x4, fixed_abs, tag = 'smem constant byte address 0x4 - core index']
  #allocation1 [shape = 'u32[72,128]{1,0:T(1,128)}', space=vmem, size = 0x9000, scoped, tag = 'internal scratch']
  %s0 = inlined_call_operand.vmem [shape: bf16[128,32], index: 0, kind: input, shape index: {}]
  %s1 = inlined_call_operand.vmem [shape: bf16[32,384], index: 1, kind: input, shape index: {}]
  %s2 = inlined_call_operand.vmem [shape: f32[1,384], index: 2, kind: input, shape index: {}]
  %s3 = inlined_call_operand.hbm [shape: f32[128,384], index: 3, kind: output, shape index: {}]
  %s4 = sld [smem:[#allocation0]]
  $region22: #{tpu_custom_call.1} parent=0
    _
  %s6 = ssub.s32 1, %s4
  %s7 = scalar_select 0, %s6, %s4
  $region1: #{tpu_custom_call.1} parent=0
    #allocation2 [shape = 'u8[196608]{0}', space=vmem, size = 0x30000, scoped, tag = 'output window, operand 0, single buffered']
    #allocation3 [shape = 's32[1]{0}', space=sflag, size = 0x4, scoped, tag = 'scoped memory for tpu_custom_call.1']
    %8 = vsyncpa [#allocation3], 0
    // Predicated region
    $region2: #{tpu_custom_call.1} parent=1 // pred_check
      _
    $region3: #{tpu_custom_call.1} parent=1 // pred_check_branch
      %10 = sbr.rel (0) target = $region5
    $region4: #{tpu_custom_call.1} parent=1 // pred_region
      _
    $region5: #{tpu_custom_call.1} parent=1 // pred_fallthru
      _
    // Predicated region
    $region6: #{tpu_custom_call.1} parent=1 // pred_check
      _
    $region7: #{tpu_custom_call.1} parent=1 // pred_check_branch
      %12 = sbr.rel (0) target = $region9
    $region8: #{tpu_custom_call.1} parent=1 // pred_region
      _
    $region9: #{tpu_custom_call.1} parent=1 // pred_fallthru
      _
    // Predicated region
    $region10: #{tpu_custom_call.1} parent=1 // pred_check
      _
    $region11: #{tpu_custom_call.1} parent=1 // pred_check_branch
      %14 = sbr.rel (0) target = $region13
    $region12: #{tpu_custom_call.1} parent=1 // pred_region
      _
    $region13: #{tpu_custom_call.1} parent=1 // pred_fallthru
      _
    %v16 = vld [vmem:[%s0] sm:$0xf]
    %v17 = vld [vmem:[%s0 + $0x4] sm:$0xf]
    %v18 = vld [vmem:[%s0 + $0x8] sm:$0xf]
    %v19 = vld [vmem:[%s0 + $0xc] sm:$0xf]
    %v20 = vld [vmem:[%s0 + $0x10] sm:$0xf]
    %v21 = vld [vmem:[%s0 + $0x14] sm:$0xf]
    %v22 = vld [vmem:[%s0 + $0x18] sm:$0xf]
    %v23 = vld [vmem:[%s0 + $0x1c] sm:$0xf]
    %v24 = vld [vmem:[%s0 + $0x20] sm:$0xf]
    %v25 = vld [vmem:[%s0 + $0x24] sm:$0xf]
    %v26 = vld [vmem:[%s0 + $0x28] sm:$0xf]
    %v27 = vld [vmem:[%s0 + $0x2c] sm:$0xf]
    %v28 = vld [vmem:[%s0 + $0x30] sm:$0xf]
    %v29 = vld [vmem:[%s0 + $0x34] sm:$0xf]
    %v30 = vld [vmem:[%s0 + $0x38] sm:$0xf]
    %v31 = vld [vmem:[%s0 + $0x3c] sm:$0xf]
    %v32 = vld [vmem:[%s1] sm:$0xff]
    %v33 = vld [vmem:[%s1 + $0x8] sm:$0xf]
    %v34 = vld [vmem:[%s1 + $0xc] sm:$0xff]
    %v35 = vld [vmem:[%s1 + $0x14] sm:$0xf]
    %v36 = vld [vmem:[%s1 + $0x18] sm:$0xff]
    %v37 = vld [vmem:[%s1 + $0x20] sm:$0xf]
    %v38 = vld [vmem:[%s1 + $0x24] sm:$0xff]
    %v39 = vld [vmem:[%s1 + $0x2c] sm:$0xf]
    %v40 = vld [vmem:[%s2] sm:$0x7]
    %v42 = vperm.slane %v40, 0
    %v43 = vperm.slane %v40, 1
    %v44 = vperm.slane %v40, 2
    %v64 = vunpack.c.l.b16 %v16
    %v65 = vunpack.c.l.b16 %v17
    %v66 = vunpack.c.l.b16 %v18
    %v67 = vunpack.c.l.b16 %v19
    %v68 = vunpack.c.l.b16 %v20
    %v69 = vunpack.c.l.b16 %v21
    %v70 = vunpack.c.l.b16 %v22
    %v71 = vunpack.c.l.b16 %v23
    %v72 = vunpack.c.l.b16 %v24
    %v73 = vunpack.c.l.b16 %v25
    %v74 = vunpack.c.l.b16 %v26
    %v75 = vunpack.c.l.b16 %v27
    %v76 = vunpack.c.l.b16 %v28
    %v77 = vunpack.c.l.b16 %v29
    %v78 = vunpack.c.l.b16 %v30
    %v79 = vunpack.c.l.b16 %v31
    %v80 = vpack.c.b16 %v65, %v64
    %v81 = vpack.c.b16 %v67, %v66
    %v82 = vpack.c.b16 %v69, %v68
    %v83 = vpack.c.b16 %v71, %v70
    %v84 = vpack.c.b16 %v73, %v72
    %v85 = vpack.c.b16 %v75, %v74
    %v86 = vpack.c.b16 %v77, %v76
    %v87 = vpack.c.b16 %v79, %v78
    %v96 = vunpack.c.l.b16 %v32
    %v97 = vunpack.c.h.b16 %v32
    %v98 = vunpack.c.l.b16 %v33
    %v99 = vunpack.c.l.b16 %v34
    %v100 = vunpack.c.h.b16 %v34
    %v101 = vunpack.c.l.b16 %v35
    %v102 = vunpack.c.l.b16 %v36
    %v103 = vunpack.c.h.b16 %v36
    %v104 = vunpack.c.l.b16 %v37
    %v105 = vunpack.c.l.b16 %v38
    %v106 = vunpack.c.h.b16 %v38
    %v107 = vunpack.c.l.b16 %v39
    %v108 = vpack.c.b16 %v99, %v96
    %v109 = vpack.c.b16 %v100, %v97
    %v110 = vpack.c.b16 %v101, %v98
    %v111 = vpack.c.b16 %v105, %v102
    %v112 = vpack.c.b16 %v106, %v103
    %v113 = vpack.c.b16 %v107, %v104
    %vm120 = vcmask 261120
    %v122 = vsel %vm120, %v80, 0
    %v125 = vsel %vm120, %v81, 0
    %v128 = vsel %vm120, %v82, 0
    %v131 = vsel %vm120, %v83, 0
    %v134 = vsel %vm120, %v84, 0
    %v137 = vsel %vm120, %v85, 0
    %v140 = vsel %vm120, %v86, 0
    %v143 = vsel %vm120, %v87, 0
    %145 = vmatpush.bf16.msra.mxu0 0
    %146 = vmatpush.bf16.msra.mxu0 0
    %147 = vmatpush.bf16.msra.mxu0 0
    %148 = vmatpush.bf16.msra.mxu0 0
    %149 = vmatpush.bf16.msra.mxu0 0
    %150 = vmatpush.bf16.msra.mxu0 0
    %151 = vmatpush.bf16.msra.mxu0 %v111
    %152 = vmatpush.bf16.msra.mxu0 %v108
    %153 = vmatmul.bf16.gmra.mxu0 %v122
    %v154 = vpop.f32.mrf.mxu0
    %v155 = vadd.f32 %v42, %v154
    %v156 = vpop.f32.mrf.mxu0
    %v157 = vadd.f32 %v42, %v156
    %158 = vmatmul.bf16.gmra.mxu0 %v125
    %v159 = vpop.f32.mrf.mxu0
    %v160 = vadd.f32 %v42, %v159
    %v161 = vpop.f32.mrf.mxu0
    %v162 = vadd.f32 %v42, %v161
    %163 = vmatmul.bf16.gmra.mxu0 %v128
    %v164 = vpop.f32.mrf.mxu0
    %v165 = vadd.f32 %v42, %v164
    %v166 = vpop.f32.mrf.mxu0
    %v167 = vadd.f32 %v42, %v166
    %168 = vmatmul.bf16.gmra.mxu0 %v131
    %v169 = vpop.f32.mrf.mxu0
    %v170 = vadd.f32 %v42, %v169
    %v171 = vpop.f32.mrf.mxu0
    %v172 = vadd.f32 %v42, %v171
    %173 = vmatmul.bf16.gmra.mxu0 %v134
    %v174 = vpop.f32.mrf.mxu0
    %v175 = vadd.f32 %v42, %v174
    %v176 = vpop.f32.mrf.mxu0
    %v177 = vadd.f32 %v42, %v176
    %178 = vmatmul.bf16.gmra.mxu0 %v137
    %v179 = vpop.f32.mrf.mxu0
    %v180 = vadd.f32 %v42, %v179
    %v181 = vpop.f32.mrf.mxu0
    %v182 = vadd.f32 %v42, %v181
    %183 = vmatmul.bf16.gmra.mxu0 %v140
    %v184 = vpop.f32.mrf.mxu0
    %v185 = vadd.f32 %v42, %v184
    %v186 = vpop.f32.mrf.mxu0
    %v187 = vadd.f32 %v42, %v186
    %188 = vmatmul.bf16.gmra.mxu0 %v143
    %v189 = vpop.f32.mrf.mxu0
    %v190 = vadd.f32 %v42, %v189
    %v191 = vpop.f32.mrf.mxu0
    %v192 = vadd.f32 %v42, %v191
    %193 = vdwg.mxu0
    %194 = vmatpush.bf16.msra.mxu0 0
    %195 = vmatpush.bf16.msra.mxu0 0
    %196 = vmatpush.bf16.msra.mxu0 0
    %197 = vmatpush.bf16.msra.mxu0 0
    %198 = vmatpush.bf16.msra.mxu0 0
    %199 = vmatpush.bf16.msra.mxu0 0
    %200 = vmatpush.bf16.msra.mxu0 %v112
    %201 = vmatpush.bf16.msra.mxu0 %v109
    %202 = vmatmul.bf16.gmra.mxu0 %v122
    %v203 = vpop.f32.mrf.mxu0
    %v204 = vadd.f32 %v43, %v203
    %v205 = vpop.f32.mrf.mxu0
    %v206 = vadd.f32 %v43, %v205
    %207 = vmatmul.bf16.gmra.mxu0 %v125
    %v208 = vpop.f32.mrf.mxu0
    %v209 = vadd.f32 %v43, %v208
    %v210 = vpop.f32.mrf.mxu0
    %v211 = vadd.f32 %v43, %v210
    %212 = vmatmul.bf16.gmra.mxu0 %v128
    %v213 = vpop.f32.mrf.mxu0
    %v214 = vadd.f32 %v43, %v213
    %v215 = vpop.f32.mrf.mxu0
    %v216 = vadd.f32 %v43, %v215
    %217 = vmatmul.bf16.gmra.mxu0 %v131
    %v218 = vpop.f32.mrf.mxu0
    %v219 = vadd.f32 %v43, %v218
    %v220 = vpop.f32.mrf.mxu0
    %v221 = vadd.f32 %v43, %v220
    %222 = vmatmul.bf16.gmra.mxu0 %v134
    %v223 = vpop.f32.mrf.mxu0
    %v224 = vadd.f32 %v43, %v223
    %v225 = vpop.f32.mrf.mxu0
    %v226 = vadd.f32 %v43, %v225
    %227 = vmatmul.bf16.gmra.mxu0 %v137
    %v228 = vpop.f32.mrf.mxu0
    %v229 = vadd.f32 %v43, %v228
    %v230 = vpop.f32.mrf.mxu0
    %v231 = vadd.f32 %v43, %v230
    %232 = vmatmul.bf16.gmra.mxu0 %v140
    %v233 = vpop.f32.mrf.mxu0
    %v234 = vadd.f32 %v43, %v233
    %v235 = vpop.f32.mrf.mxu0
    %v236 = vadd.f32 %v43, %v235
    %237 = vmatmul.bf16.gmra.mxu0 %v143
    %v238 = vpop.f32.mrf.mxu0
    %v239 = vadd.f32 %v43, %v238
    %v240 = vpop.f32.mrf.mxu0
    %v241 = vadd.f32 %v43, %v240
    %242 = vdwg.mxu0
    %243 = vmatpush.bf16.msra.mxu0 0
    %244 = vmatpush.bf16.msra.mxu0 0
    %245 = vmatpush.bf16.msra.mxu0 0
    %246 = vmatpush.bf16.msra.mxu0 0
    %247 = vmatpush.bf16.msra.mxu0 0
    %248 = vmatpush.bf16.msra.mxu0 0
    %249 = vmatpush.bf16.msra.mxu0 %v113
    %250 = vmatpush.bf16.msra.mxu0 %v110
    %251 = vmatmul.bf16.gmra.mxu0 %v122
    %v252 = vpop.f32.mrf.mxu0
    %v253 = vadd.f32 %v44, %v252
    %v254 = vpop.f32.mrf.mxu0
    %v255 = vadd.f32 %v44, %v254
    %256 = vmatmul.bf16.gmra.mxu0 %v125
    %v257 = vpop.f32.mrf.mxu0
    %v258 = vadd.f32 %v44, %v257
    %v259 = vpop.f32.mrf.mxu0
    %v260 = vadd.f32 %v44, %v259
    %261 = vmatmul.bf16.gmra.mxu0 %v128
    %v262 = vpop.f32.mrf.mxu0
    %v263 = vadd.f32 %v44, %v262
    %v264 = vpop.f32.mrf.mxu0
    %v265 = vadd.f32 %v44, %v264
    %266 = vmatmul.bf16.gmra.mxu0 %v131
    %v267 = vpop.f32.mrf.mxu0
    %v268 = vadd.f32 %v44, %v267
    %v269 = vpop.f32.mrf.mxu0
    %v270 = vadd.f32 %v44, %v269
    %271 = vmatmul.bf16.gmra.mxu0 %v134
    %v272 = vpop.f32.mrf.mxu0
    %v273 = vadd.f32 %v44, %v272
    %v274 = vpop.f32.mrf.mxu0
    %v275 = vadd.f32 %v44, %v274
    %276 = vmatmul.bf16.gmra.mxu0 %v137
    %v277 = vpop.f32.mrf.mxu0
    %v278 = vadd.f32 %v44, %v277
    %v279 = vpop.f32.mrf.mxu0
    %v280 = vadd.f32 %v44, %v279
    %281 = vmatmul.bf16.gmra.mxu0 %v140
    %v282 = vpop.f32.mrf.mxu0
    %v283 = vadd.f32 %v44, %v282
    %v284 = vpop.f32.mrf.mxu0
    %v285 = vadd.f32 %v44, %v284
    %286 = vmatmul.bf16.gmra.mxu0 %v143
    %v287 = vpop.f32.mrf.mxu0
    %v288 = vadd.f32 %v44, %v287
    %v289 = vpop.f32.mrf.mxu0
    %v290 = vadd.f32 %v44, %v289
    %291 = vdwg.mxu0
    %292 = vst [vmem:[#allocation2] sm:$0xff] %v155
    %293 = vst [vmem:[#allocation2 + $0x8] sm:$0xff] %v204
    %294 = vst [vmem:[#allocation2 + $0x10] sm:$0xff] %v253
    %295 = vst [vmem:[#allocation2 + $0x18] sm:$0xff] %v157
    %296 = vst [vmem:[#allocation2 + $0x20] sm:$0xff] %v206
    %297 = vst [vmem:[#allocation2 + $0x28] sm:$0xff] %v255
    %298 = vst [vmem:[#allocation2 + $0x30] sm:$0xff] %v160
    %299 = vst [vmem:[#allocation2 + $0x38] sm:$0xff] %v209
    %300 = vst [vmem:[#allocation2 + $0x40] sm:$0xff] %v258
    %301 = vst [vmem:[#allocation2 + $0x48] sm:$0xff] %v162
    %302 = vst [vmem:[#allocation2 + $0x50] sm:$0xff] %v211
    %303 = vst [vmem:[#allocation2 + $0x58] sm:$0xff] %v260
    %304 = vst [vmem:[#allocation2 + $0x60] sm:$0xff] %v165
    %305 = vst [vmem:[#allocation2 + $0x68] sm:$0xff] %v214
    %306 = vst [vmem:[#allocation2 + $0x70] sm:$0xff] %v263
    %307 = vst [vmem:[#allocation2 + $0x78] sm:$0xff] %v167
    %308 = vst [vmem:[#allocation2 + $0x80] sm:$0xff] %v216
    %309 = vst [vmem:[#allocation2 + $0x88] sm:$0xff] %v265
    %310 = vst [vmem:[#allocation2 + $0x90] sm:$0xff] %v170
    %311 = vst [vmem:[#allocation2 + $0x98] sm:$0xff] %v219
    %312 = vst [vmem:[#allocation2 + $0xa0] sm:$0xff] %v268
    %313 = vst [vmem:[#allocation2 + $0xa8] sm:$0xff] %v172
    %314 = vst [vmem:[#allocation2 + $0xb0] sm:$0xff] %v221
    %315 = vst [vmem:[#allocation2 + $0xb8] sm:$0xff] %v270
    %316 = vst [vmem:[#allocation2 + $0xc0] sm:$0xff] %v175
    %317 = vst [vmem:[#allocation2 + $0xc8] sm:$0xff] %v224
    %318 = vst [vmem:[#allocation2 + $0xd0] sm:$0xff] %v273
    %319 = vst [vmem:[#allocation2 + $0xd8] sm:$0xff] %v177
    %320 = vst [vmem:[#allocation2 + $0xe0] sm:$0xff] %v226
    %321 = vst [vmem:[#allocation2 + $0xe8] sm:$0xff] %v275
    %322 = vst [vmem:[#allocation2 + $0xf0] sm:$0xff] %v180
    %323 = vst [vmem:[#allocation2 + $0xf8] sm:$0xff] %v229
    %324 = vst [vmem:[#allocation2 + $0x100] sm:$0xff] %v278
    %325 = vst [vmem:[#allocation2 + $0x108] sm:$0xff] %v182
    %326 = vst [vmem:[#allocation2 + $0x110] sm:$0xff] %v231
    %327 = vst [vmem:[#allocation2 + $0x118] sm:$0xff] %v280
    %328 = vst [vmem:[#allocation2 + $0x120] sm:$0xff] %v185
    %329 = vst [vmem:[#allocation2 + $0x128] sm:$0xff] %v234
    %330 = vst [vmem:[#allocation2 + $0x130] sm:$0xff] %v283
    %331 = vst [vmem:[#allocation2 + $0x138] sm:$0xff] %v187
    %332 = vst [vmem:[#allocation2 + $0x140] sm:$0xff] %v236
    %333 = vst [vmem:[#allocation2 + $0x148] sm:$0xff] %v285
    %334 = vst [vmem:[#allocation2 + $0x150] sm:$0xff] %v190
    %335 = vst [vmem:[#allocation2 + $0x158] sm:$0xff] %v239
    %336 = vst [vmem:[#allocation2 + $0x160] sm:$0xff] %v288
    %337 = vst [vmem:[#allocation2 + $0x168] sm:$0xff] %v192
    %338 = vst [vmem:[#allocation2 + $0x170] sm:$0xff] %v241
    %339 = vst [vmem:[#allocation2 + $0x178] sm:$0xff] %v290
    // Predicated region
    $region14: #{tpu_custom_call.1} parent=1 // pred_check
      _
    $region15: #{tpu_custom_call.1} parent=1 // pred_check_branch
      %341 = sbr.rel (0) target = $region17
    $region16: #{tpu_custom_call.1} parent=1 // pred_region
      %343 = vsyncadd [#allocation3], 0
      %s344 = sshll.u32 [#allocation2], 4
      %s345 = int_to_ptr.vmem [resolvable:$true] %s344
      %s346 = sshll.u32 %s3, 4
      %s347 = int_to_ptr.hbm [resolvable:$true] %s346
      %352 = dma.vmem_to_hbm [thread:$0]  %s345, 6144, %s347, [#allocation3], 384, 384, 24
    $region17: #{tpu_custom_call.1} parent=1 // pred_fallthru
      _
    // Predicated region
    $region18: #{tpu_custom_call.1} parent=1 // pred_check
      _
    $region19: #{tpu_custom_call.1} parent=1 // pred_check_branch
      %354 = sbr.rel (0) target = $region21
    $region20: #{tpu_custom_call.1} parent=1 // pred_region
      %356 = dma.done [#allocation3], 6144
    $region21: #{tpu_custom_call.1} parent=1 // pred_fallthru
      _
    %357 = vsyncpa [#allocation3], 1

</llo_original>
